<compile_context>
chip_gen: v5e
topology: v5e:2x2
jax: 0.10.0
libtpu: 0.0.40
codegen_flags: <defaults>
</compile_context>

<pallas_src>
import numpy as np
import jax
import jax.numpy as jnp
from jax.experimental import pallas as pl
from jax.experimental.pallas import tpu as pltpu


# --------------------------------------------------------------------------
# Generation-aware sizing
# --------------------------------------------------------------------------
def _vmem_capacity_bytes():
    try:
        return int(pltpu.get_tpu_info().vmem_capacity_bytes)
    except Exception:
        return 64 * 1024 * 1024        # conservative fallback (v7x per-TC)


_VMEM_CAP = _vmem_capacity_bytes()
# ~24 MiB tile budget on 128 MiB parts (v5e/v6e), ~14 MiB on 64 MiB (v7x).
_TILE_BUDGET = (24 << 20) if _VMEM_CAP >= (100 << 20) else (14 << 20)
# Scoped VMEM limit: leave headroom for compiler-internal scratch.
_VMEM_LIMIT = min(int(_VMEM_CAP * 0.7), 100 << 20)

_USE_BF16_MXU = False   # v6e/v7x: ~2-3x MXU throughput once C >= ~128; inputs
                        # lose mantissa so only enable with a loosened tolerance.


def _choose_tile(P, C, B):
    """Pixel-tile (lane) size: multiple of 128 (or full P), working set of
    ~56*C bytes/pixel (streams + f32 temporaries, double-buffered) under the
    per-generation budget, and >= 2 tiles per batch when B == 1 (v7x)."""
    per_pixel = 56 * max(int(C), 1)
    tp = _TILE_BUDGET // per_pixel
    if B == 1:                       # keep both v7x TensorCores busy at B == 1
        tp = min(tp, pl.cdiv(P, 2))
    if tp >= P:
        return int(P)
    tp = max(128, (tp // 128) * 128)
    return int(min(tp, P))


def _mxu(a, b):
    if _USE_BF16_MXU:
        a = a.astype(jnp.bfloat16)
        b = b.astype(jnp.bfloat16)
    return jnp.dot(a, b, preferred_element_type=jnp.float32)


# --------------------------------------------------------------------------
# Kernel 1: pointwise (1x1) convolution, channel-sublane / pixel-lane layout.
#           y[:, p] = W @ x[:, p] + b
# --------------------------------------------------------------------------
def _conv1x1_kernel(x_ref, w_ref, b_ref, o_ref):
    # x_ref: (1, Cin, TP), w_ref: (Cout, Cin), b_ref: (Cout, 1)
    y = _mxu(w_ref[...], x_ref[0]) + b_ref[...]
    o_ref[0] = y.astype(o_ref.dtype)


def conv1x1_nc(x_f, w_oi, b_o1):
    B, Cin, P = x_f.shape
    Cout = w_oi.shape[0]
    tp = _choose_tile(P, max(Cin, Cout), B)
    grid = (B, pl.cdiv(P, tp))
    return pl.pallas_call(
        _conv1x1_kernel,
        out_shape=jax.ShapeDtypeStruct((B, Cout, P), x_f.dtype),
        grid=grid,
        in_specs=[
            pl.BlockSpec((1, Cin, tp), lambda b, p: (b, 0, p)),
            pl.BlockSpec((Cout, Cin), lambda b, p: (0, 0)),
            pl.BlockSpec((Cout, 1), lambda b, p: (0, 0)),
        ],
        out_specs=pl.BlockSpec((1, Cout, tp), lambda b, p: (b, 0, p)),
        compiler_params=pltpu.CompilerParams(
            dimension_semantics=("parallel", "parallel"),
            vmem_limit_bytes=_VMEM_LIMIT),
    )(x_f, w_oi, b_o1)


# --------------------------------------------------------------------------
# Kernel 2: fused  mul -> pixel-attention -> x*(ca+sa+pa) -> final 1x1 -> ReLU
# Only 2 MXU dots per tile; (ca+sa) is hoisted per batch and broadcast.
# --------------------------------------------------------------------------
def _pff2_fused_kernel(cur_ref, up_ref, cs_ref, w_pa_ref, b_pa_ref,
                       w_fc_ref, b_fc_ref, o_ref):
    cur = cur_ref[0]                                   # (C, TP)
    mul = cur * up_ref[0]                              # (C, TP)
    x2 = jnp.concatenate([cur, mul], axis=0)           # (2C, TP) sublane concat

    # pixel attention over the "concat" channels, single dot / single sigmoid
    s = _mxu(w_pa_ref[...], x2) + b_pa_ref[...]        # (2C, TP)
    # att = x2 * (ca + sa + pa); (ca+sa) per batch, pa per pixel (f32 VPU/EUP)
    att = x2 * (cs_ref[0] + jax.nn.sigmoid(s))

    y = _mxu(w_fc_ref[...], att) + b_fc_ref[...]       # (C, TP)
    o_ref[0] = jnp.maximum(y, 0.0).astype(o_ref.dtype)  # LeakyReLU(0.0) == ReLU


def pff2_fused(cur_f, up_f, cs, params):
    B, C, P = cur_f.shape
    C2 = 2 * C
    tp = _choose_tile(P, C, B)
    grid = (B, pl.cdiv(P, tp))

    row = lambda b, p: (b, 0, p)     # P-tiled per-batch tensors
    bat = lambda b, p: (b, 0, 0)     # per-batch (ca+sa) vector
    rep = lambda b, p: (0, 0)        # weights, replicated across the grid

    return pl.pallas_call(
        _pff2_fused_kernel,
        out_shape=jax.ShapeDtypeStruct((B, C, P), cur_f.dtype),
        grid=grid,
        in_specs=[
            pl.BlockSpec((1, C, tp), row),      # cur
            pl.BlockSpec((1, C, tp), row),      # up
            pl.BlockSpec((1, C2, 1), bat),      # ca + sa
            pl.BlockSpec((C2, C2), rep),        # w_pa  (out, in)
            pl.BlockSpec((C2, 1), rep),         # b_pa
            pl.BlockSpec((C, C2), rep),         # w_fc  (out, in)
            pl.BlockSpec((C, 1), rep),          # b_fc
        ],
        out_specs=pl.BlockSpec((1, C, tp), row),
        compiler_params=pltpu.CompilerParams(
            dimension_semantics=("parallel", "parallel"),
            vmem_limit_bytes=_VMEM_LIMIT),
    )(cur_f, up_f, cs, params["w_pa"], params["b_pa"],
      params["w_fc"], params["b_fc"])


# --------------------------------------------------------------------------
# Glue: PyTorch-exact bilinear x2 upsample (align_corners=False) as
#       separable interpolation matrices.
# --------------------------------------------------------------------------
def make_bilinear_matrix(out_size, in_size):
    scale = in_size / out_size
    o = np.arange(out_size)
    src = (o + 0.5) * scale - 0.5
    src = np.maximum(src, 0.0)
    i0 = np.minimum(np.floor(src).astype(np.int64), in_size - 1)
    i1 = np.minimum(i0 + 1, in_size - 1)
    l1 = (src - i0).astype(np.float32)
    l0 = 1.0 - l1
    Wm = np.zeros((out_size, in_size), dtype=np.float32)
    np.add.at(Wm, (o, i0), l0)
    np.add.at(Wm, (o, i1), l1)
    return Wm


# --------------------------------------------------------------------------
# PFF2Pre forward.  cur: (B,C,H,W)  nex: (B,C,H/2,W/2)  -> (B,C,H,W)
# --------------------------------------------------------------------------
def pff2pre_forward(params, cur_nchw, nex_nchw):
    B, C, H, W = cur_nchw.shape
    _, _, h, w = nex_nchw.shape
    P = H * W

    # up = up_conv1(nex)    (Pallas kernel 1, cheap half-res tensor, no transpose)
    nex_f = nex_nchw.reshape(B, C, h * w)
    us = conv1x1_nc(nex_f, params["w1"], params["b1"]).reshape(B, C, h, w)

    # up = Upsample(x2, bilinear, align_corners=False)   (XLA glue, NCHW)
    Wh = jnp.asarray(make_bilinear_matrix(H, h))
    Ww = jnp.asarray(make_bilinear_matrix(W, w))
    up = jnp.einsum("Hh,bchw->bcHw", Wh, us)
    up = jnp.einsum("Ww,bcHw->bcHW", Ww, up)
    up_f = up.reshape(B, C, P)
    cur_f = cur_nchw.reshape(B, C, P)

    # Hoisted global-average + channel/spatial attention (tiny per-batch math).
    avg_cur = jnp.mean(cur_f, axis=2)                        # (B, C)
    avg_mul = jnp.mean(cur_f * up_f, axis=2)                 # (B, C)
    avg = jnp.concatenate([avg_cur, avg_mul], axis=-1)       # (B, 2C)
    ca = jax.nn.sigmoid(avg @ params["w_ca"] + params["b_ca"])
    sa = jax.nn.sigmoid(avg)
    cs = (ca + sa).reshape(B, 2 * C, 1)                      # channel-sublane

    # fused mul / pixel-attn / combine / final conv / ReLU   (Pallas kernel 2)
    out_f = pff2_fused(cur_f, up_f, cs, params)
    return out_f.reshape(B, C, H, W)


# --------------------------------------------------------------------------
# Pure-JAX reference (mirrors the PyTorch forward, NCHW) for verification.
# --------------------------------------------------------------------------
def reference_forward(params, cur, nex):
    B, C, H, W = cur.shape
    _, _, h, w = nex.shape
    C2 = 2 * C
    up = jnp.einsum("oc,bchw->bohw", params["w1"], nex) \
        + params["b1"].reshape(1, C, 1, 1)
    Wh = jnp.asarray(make_bilinear_matrix(H, h))
    Ww = jnp.asarray(make_bilinear_matrix(W, w))
    up = jnp.einsum("Hh,Ww,bchw->bcHW", Wh, Ww, up)
    mul = cur * up
    concat = jnp.concatenate([cur, mul], axis=1)                     # (B,2C,H,W)
    avg = jnp.mean(concat, axis=(2, 3))                              # (B,2C)
    ca = jax.nn.sigmoid(avg @ params["w_ca"] + params["b_ca"])[:, :, None, None]
    sa = jax.nn.sigmoid(avg)[:, :, None, None]
    pa = jax.nn.sigmoid(jnp.einsum("oc,bchw->bohw", params["w_pa"], concat)
                        + params["b_pa"].reshape(1, C2, 1, 1))
    att = concat * ca + concat * sa + concat * pa
    x = jnp.einsum("oc,bchw->bohw", params["w_fc"], att) \
        + params["b_fc"].reshape(1, C, 1, 1)
    return jnp.maximum(x, 0.0)


# --------------------------------------------------------------------------
def init_params(key, C):
    C2 = 2 * C
    ks = jax.random.split(key, 8)
    # Conv 1x1 weights stored PyTorch-style as (out, in), biases as (out, 1);
    # the ca dense layer as (in, out) since it is applied as avg @ w_ca.
    return {
        "w1":   0.1 * jax.random.normal(ks[0], (C, C), jnp.float32),    # up_conv1
        "b1":   0.1 * jax.random.normal(ks[1], (C, 1), jnp.float32),
        "w_ca": 0.1 * jax.random.normal(ks[2], (C2, C2), jnp.float32),  # ca_dense
        "b_ca": 0.1 * jax.random.normal(ks[3], (1, C2), jnp.float32),
        "w_pa": 0.1 * jax.random.normal(ks[4], (C2, C2), jnp.float32),  # pa_conv
        "b_pa": 0.1 * jax.random.normal(ks[5], (C2, 1), jnp.float32),
        "w_fc": 0.1 * jax.random.normal(ks[6], (C, C2), jnp.float32),   # final_conv
        "b_fc": 0.1 * jax.random.normal(ks[7], (C, 1), jnp.float32),
    }


if __name__ == "__main__":
    B, C, H, W = 2, 4, 16, 16
    key = jax.random.PRNGKey(0)
    k_cur, k_nex, k_par = jax.random.split(key, 3)

    cur = jax.random.normal(k_cur, (B, C, H, W), jnp.float32)
    nex = jax.random.normal(k_nex, (B, C, H // 2, W // 2), jnp.float32)
    params = init_params(k_par, C)

    fwd = jax.jit(pff2pre_forward)
    out = jax.block_until_ready(fwd(params, cur, nex))

    ref = jax.block_until_ready(reference_forward(params, cur, nex))
    assert out.shape == (B, C, H, W)
    np.testing.assert_allclose(np.asarray(out), np.asarray(ref),
                               rtol=1e-4, atol=1e-4)
    print("KERNEL_OK")
</pallas_src>

<mosaic_0001>
module attributes {stable_mosaic.version = 11 : i64} {
  func.func @_conv1x1_kernel(%arg0: i32, %arg1: i32, %arg2: memref<1x4x64xf32, #tpu.memory_space<vmem>>, %arg3: memref<4x4xf32, #tpu.memory_space<vmem>>, %arg4: memref<4x1xf32, #tpu.memory_space<vmem>>, %arg5: memref<1x4x64xf32, #tpu.memory_space<vmem>>) attributes {dimension_semantics = [#tpu.dimension_semantics<parallel>, #tpu.dimension_semantics<parallel>], iteration_bounds = array<i64: 2, 1>, scalar_prefetch = 0 : i64, scratch_operands = 0 : i64, tpu.core_type = #tpu.core_type<tc>, window_params = [{transform_indices = @transform_0, window_bounds = array<i64: 1, 4, 64>}, {pipeline_mode = #tpu.pipeline_mode<synchronous>, transform_indices = @transform_1, window_bounds = array<i64: 4, 4>}, {pipeline_mode = #tpu.pipeline_mode<synchronous>, transform_indices = @transform_2, window_bounds = array<i64: 4, 1>}, {transform_indices = @transform_3, window_bounds = array<i64: 1, 4, 64>}]} {
    %c0 = arith.constant 0 : index
    %c0_0 = arith.constant 0 : index
    %0 = vector.load %arg3[%c0, %c0_0] : memref<4x4xf32, #tpu.memory_space<vmem>>, vector<4x4xf32>
    %c0_1 = arith.constant 0 : index
    %c0_2 = arith.constant 0 : index
    %c0_3 = arith.constant 0 : index
    %1 = vector.load %arg2[%c0_1, %c0_2, %c0_3] : memref<1x4x64xf32, #tpu.memory_space<vmem>>, vector<1x4x64xf32>
    %2 = vector.shape_cast %1 : vector<1x4x64xf32> to vector<4x64xf32>
    %cst = arith.constant dense<0.000000e+00> : vector<4x64xf32>
    %3 = tpu.matmul %0, %2, %cst {dimension_numbers = #tpu.dot_dimension_numbers<[1], [0], [0], [1], [0, 0, 1, 1], [], []>} : vector<4x4xf32>, vector<4x64xf32>, vector<4x64xf32> -> vector<4x64xf32>
    %c0_4 = arith.constant 0 : index
    %c0_5 = arith.constant 0 : index
    %4 = vector.load %arg4[%c0_4, %c0_5] : memref<4x1xf32, #tpu.memory_space<vmem>>, vector<4x1xf32>
    %5 = vector.broadcast %4 : vector<4x1xf32> to vector<4x64xf32>
    %6 = arith.addf %3, %5 : vector<4x64xf32>
    %c0_6 = arith.constant 0 : index
    %c0_7 = arith.constant 0 : index
    %c0_8 = arith.constant 0 : index
    %7 = vector.load %arg5[%c0_6, %c0_7, %c0_8] : memref<1x4x64xf32, #tpu.memory_space<vmem>>, vector<1x4x64xf32>
    %8 = vector.shape_cast %7 : vector<1x4x64xf32> to vector<4x64xf32>
    %9 = vector.shape_cast %6 : vector<4x64xf32> to vector<1x4x64xf32>
    tpu.vector_store %arg5[%c0_6, %c0_7, %c0_8], %9 {strides = array<i32>} : memref<1x4x64xf32, #tpu.memory_space<vmem>>, vector<1x4x64xf32>,
    return
  }
  func.func @transform_0(%arg0: i32, %arg1: i32) -> (i32, i32, i32) {
    %c0_i32 = arith.constant 0 : i32
    %c0_i32_0 = arith.constant 0 : i32
    return %arg0, %c0_i32, %arg1 : i32, i32, i32
  }
  func.func @transform_1(%arg0: i32, %arg1: i32) -> (i32, i32) {
    %c0_i32 = arith.constant 0 : i32
    %c0_i32_0 = arith.constant 0 : i32
    %c0_i32_1 = arith.constant 0 : i32
    return %c0_i32, %c0_i32_0 : i32, i32
  }
  func.func @transform_2(%arg0: i32, %arg1: i32) -> (i32, i32) {
    %c0_i32 = arith.constant 0 : i32
    %c0_i32_0 = arith.constant 0 : i32
    %c0_i32_1 = arith.constant 0 : i32
    return %c0_i32, %c0_i32_0 : i32, i32
  }
  func.func @transform_3(%arg0: i32, %arg1: i32) -> (i32, i32, i32) {
    %c0_i32 = arith.constant 0 : i32
    %c0_i32_0 = arith.constant 0 : i32
    return %arg0, %c0_i32, %arg1 : i32, i32, i32
  }
}

module attributes {stable_mosaic.version = 11 : i64} {
  func.func @_pff2_fused_kernel(%arg0: i32, %arg1: i32, %arg2: memref<1x4x256xf32, #tpu.memory_space<vmem>>, %arg3: memref<1x4x256xf32, #tpu.memory_space<vmem>>, %arg4: memref<1x8x1xf32, #tpu.memory_space<vmem>>, %arg5: memref<8x8xf32, #tpu.memory_space<vmem>>, %arg6: memref<8x1xf32, #tpu.memory_space<vmem>>, %arg7: memref<4x8xf32, #tpu.memory_space<vmem>>, %arg8: memref<4x1xf32, #tpu.memory_space<vmem>>, %arg9: memref<1x4x256xf32, #tpu.memory_space<vmem>>) attributes {dimension_semantics = [#tpu.dimension_semantics<parallel>, #tpu.dimension_semantics<parallel>], iteration_bounds = array<i64: 2, 1>, scalar_prefetch = 0 : i64, scratch_operands = 0 : i64, tpu.core_type = #tpu.core_type<tc>, window_params = [{transform_indices = @transform_0, window_bounds = array<i64: 1, 4, 256>}, {transform_indices = @transform_1, window_bounds = array<i64: 1, 4, 256>}, {transform_indices = @transform_2, window_bounds = array<i64: 1, 8, 1>}, {pipeline_mode = #tpu.pipeline_mode<synchronous>, transform_indices = @transform_3, window_bounds = array<i64: 8, 8>}, {pipeline_mode = #tpu.pipeline_mode<synchronous>, transform_indices = @transform_4, window_bounds = array<i64: 8, 1>}, {pipeline_mode = #tpu.pipeline_mode<synchronous>, transform_indices = @transform_5, window_bounds = array<i64: 4, 8>}, {pipeline_mode = #tpu.pipeline_mode<synchronous>, transform_indices = @transform_6, window_bounds = array<i64: 4, 1>}, {transform_indices = @transform_7, window_bounds = array<i64: 1, 4, 256>}]} {
    %c0 = arith.constant 0 : index
    %c0_0 = arith.constant 0 : index
    %c0_1 = arith.constant 0 : index
    %0 = vector.load %arg2[%c0, %c0_0, %c0_1] : memref<1x4x256xf32, #tpu.memory_space<vmem>>, vector<1x4x256xf32>
    %1 = vector.shape_cast %0 : vector<1x4x256xf32> to vector<4x256xf32>
    %c0_2 = arith.constant 0 : index
    %c0_3 = arith.constant 0 : index
    %c0_4 = arith.constant 0 : index
    %2 = vector.load %arg3[%c0_2, %c0_3, %c0_4] : memref<1x4x256xf32, #tpu.memory_space<vmem>>, vector<1x4x256xf32>
    %3 = vector.shape_cast %2 : vector<1x4x256xf32> to vector<4x256xf32>
    %4 = arith.mulf %1, %3 : vector<4x256xf32>
    %5 = tpu.concatenate %1, %4 in 0 : vector<4x256xf32>, vector<4x256xf32> -> vector<8x256xf32>
    %c0_5 = arith.constant 0 : index
    %c0_6 = arith.constant 0 : index
    %6 = vector.load %arg5[%c0_5, %c0_6] : memref<8x8xf32, #tpu.memory_space<vmem>>, vector<8x8xf32>
    %cst = arith.constant dense<0.000000e+00> : vector<8x256xf32>
    %7 = tpu.matmul %6, %5, %cst {dimension_numbers = #tpu.dot_dimension_numbers<[1], [0], [0], [1], [0, 0, 1, 1], [], []>} : vector<8x8xf32>, vector<8x256xf32>, vector<8x256xf32> -> vector<8x256xf32>
    %c0_7 = arith.constant 0 : index
    %c0_8 = arith.constant 0 : index
    %8 = vector.load %arg6[%c0_7, %c0_8] : memref<8x1xf32, #tpu.memory_space<vmem>>, vector<8x1xf32>
    %9 = vector.broadcast %8 : vector<8x1xf32> to vector<8x256xf32>
    %10 = arith.addf %7, %9 : vector<8x256xf32>
    %c0_9 = arith.constant 0 : index
    %c0_10 = arith.constant 0 : index
    %c0_11 = arith.constant 0 : index
    %11 = vector.load %arg4[%c0_9, %c0_10, %c0_11] : memref<1x8x1xf32, #tpu.memory_space<vmem>>, vector<1x8x1xf32>
    %12 = vector.shape_cast %11 : vector<1x8x1xf32> to vector<8x1xf32>
    %13 = arith.negf %10 : vector<8x256xf32>
    %14 = math.exp %13 : vector<8x256xf32>
    %cst_12 = arith.constant 1.000000e+00 : f32
    %15 = vector.broadcast %cst_12 : f32 to vector<8x256xf32>
    %16 = arith.addf %15, %14 : vector<8x256xf32>
    %17 = arith.divf %15, %16 : vector<8x256xf32>
    %18 = vector.broadcast %12 : vector<8x1xf32> to vector<8x256xf32>
    %19 = arith.addf %18, %17 : vector<8x256xf32>
    %20 = arith.mulf %5, %19 : vector<8x256xf32>
    %c0_13 = arith.constant 0 : index
    %c0_14 = arith.constant 0 : index
    %21 = vector.load %arg7[%c0_13, %c0_14] : memref<4x8xf32, #tpu.memory_space<vmem>>, vector<4x8xf32>
    %cst_15 = arith.constant dense<0.000000e+00> : vector<4x256xf32>
    %22 = tpu.matmul %21, %20, %cst_15 {dimension_numbers = #tpu.dot_dimension_numbers<[1], [0], [0], [1], [0, 0, 1, 1], [], []>} : vector<4x8xf32>, vector<8x256xf32>, vector<4x256xf32> -> vector<4x256xf32>
    %c0_16 = arith.constant 0 : index
    %c0_17 = arith.constant 0 : index
    %23 = vector.load %arg8[%c0_16, %c0_17] : memref<4x1xf32, #tpu.memory_space<vmem>>, vector<4x1xf32>
    %24 = vector.broadcast %23 : vector<4x1xf32> to vector<4x256xf32>
    %25 = arith.addf %22, %24 : vector<4x256xf32>
    %cst_18 = arith.constant 0.000000e+00 : f32
    %26 = vector.broadcast %cst_18 : f32 to vector<4x256xf32>
    %27 = arith.maximumf %25, %26 : vector<4x256xf32>
    %c0_19 = arith.constant 0 : index
    %c0_20 = arith.constant 0 : index
    %c0_21 = arith.constant 0 : index
    %28 = vector.load %arg9[%c0_19, %c0_20, %c0_21] : memref<1x4x256xf32, #tpu.memory_space<vmem>>, vector<1x4x256xf32>
    %29 = vector.shape_cast %28 : vector<1x4x256xf32> to vector<4x256xf32>
    %30 = vector.shape_cast %27 : vector<4x256xf32> to vector<1x4x256xf32>
    tpu.vector_store %arg9[%c0_19, %c0_20, %c0_21], %30 {strides = array<i32>} : memref<1x4x256xf32, #tpu.memory_space<vmem>>, vector<1x4x256xf32>,
    return
  }
  func.func @transform_0(%arg0: i32, %arg1: i32) -> (i32, i32, i32) {
    %c0_i32 = arith.constant 0 : i32
    %c0_i32_0 = arith.constant 0 : i32
    return %arg0, %c0_i32, %arg1 : i32, i32, i32
  }
  func.func @transform_1(%arg0: i32, %arg1: i32) -> (i32, i32, i32) {
    %c0_i32 = arith.constant 0 : i32
    %c0_i32_0 = arith.constant 0 : i32
    return %arg0, %c0_i32, %arg1 : i32, i32, i32
  }
  func.func @transform_2(%arg0: i32, %arg1: i32) -> (i32, i32, i32) {
    %c0_i32 = arith.constant 0 : i32
    %c0_i32_0 = arith.constant 0 : i32
    %c0_i32_1 = arith.constant 0 : i32
    return %arg0, %c0_i32, %c0_i32_0 : i32, i32, i32
  }
  func.func @transform_3(%arg0: i32, %arg1: i32) -> (i32, i32) {
    %c0_i32 = arith.constant 0 : i32
    %c0_i32_0 = arith.constant 0 : i32
    %c0_i32_1 = arith.constant 0 : i32
    return %c0_i32, %c0_i32_0 : i32, i32
  }
  func.func @transform_4(%arg0: i32, %arg1: i32) -> (i32, i32) {
    %c0_i32 = arith.constant 0 : i32
    %c0_i32_0 = arith.constant 0 : i32
    %c0_i32_1 = arith.constant 0 : i32
    return %c0_i32, %c0_i32_0 : i32, i32
  }
  func.func @transform_5(%arg0: i32, %arg1: i32) -> (i32, i32) {
    %c0_i32 = arith.constant 0 : i32
    %c0_i32_0 = arith.constant 0 : i32
    %c0_i32_1 = arith.constant 0 : i32
    return %c0_i32, %c0_i32_0 : i32, i32
  }
  func.func @transform_6(%arg0: i32, %arg1: i32) -> (i32, i32) {
    %c0_i32 = arith.constant 0 : i32
    %c0_i32_0 = arith.constant 0 : i32
    %c0_i32_1 = arith.constant 0 : i32
    return %c0_i32, %c0_i32_0 : i32, i32
  }
  func.func @transform_7(%arg0: i32, %arg1: i32) -> (i32, i32, i32) {
    %c0_i32 = arith.constant 0 : i32
    %c0_i32_0 = arith.constant 0 : i32
    return %arg0, %c0_i32, %arg1 : i32, i32, i32
  }
}

</mosaic_0001>

<llo_original>
// kernel: pff2pre_forward.2
$region0: #{pff2pre_forward.2}
  #allocation0 [shape = 'u32[]', space=smem, size = 0x4, offset = 0x4, fixed_abs, tag = 'smem constant byte address 0x4 - core index']
  #allocation1 [shape = 'u32[72,128]{1,0:T(1,128)}', space=vmem, size = 0x9000, scoped, tag = 'internal scratch']
  %s0 = inlined_call_operand.vmem [shape: f32[2,4,64], index: 0, kind: input, shape index: {}]
  %s1 = inlined_call_operand.vmem [shape: f32[4,4], index: 1, kind: input, shape index: {}]
  %s2 = inlined_call_operand.vmem [shape: f32[4,1], index: 2, kind: input, shape index: {}]
  %s3 = inlined_call_operand.vmem [shape: f32[2,4,64], index: 3, kind: output, shape index: {}]
  %s4 = sld [smem:[#allocation0]]
  $region45: #{pff2pre_forward.2} parent=0
    _
  %s6 = ssub.s32 1, %s4
  %s7 = scalar_select 0, %s6, %s4
  loop: start=0, step=1, limit=4
  $region2: #{pff2pre_forward.2} parent=0 // loop_pre_header
    _
  $region3: #{pff2pre_forward.2} parent=0 // loop_header
    %s9 = sphi 0, %s13
    %p10 = scmp.ge.s32.totalorder %s9, 4
    %s16 = sphi 0, %s28
    %s17 = sphi 0, %s24
    %s18 = sphi 0, %s16
    %s19 = sphi 0, %s17
    %s20 = sphi 0, %s18
    %s21 = sphi 0, %s19
    %s33 = sphi 0, %s35
    %s36 = sphi 0, %s33
    %s37 = sphi 0, %s36
    %s53 = sphi 0, %s37
    %s57 = sphi 0, %s57
    %s59 = sphi 0, %s57
    %s60 = sphi 0, %s59
    %s74 = sphi 0, %s60
    %s78 = sphi 0, %s78
    %s80 = sphi 0, %s78
    %s81 = sphi 0, %s80
    %s95 = sphi 0, %s81
    %s103 = sphi 0, %s105
    %s106 = sphi 0, %s103
    %s107 = sphi 0, %s106
    %s123 = sphi 0, %s107
  $region4: #{pff2pre_forward.2} parent=0 // loop_header_branch
    %12 = sbr.rel (%p10) target = $region8
  $region5: #{pff2pre_forward.2} parent=0 // loop_body
    %s14 = ssub.s32 %s9, 1
    %s15 = ssub.s32 %s9, 2
    %s22 = sadd.s32 1, %s17
    %p23 = scmp.ge.s32.totalorder %s22, 1
    %s24 = scalar_select %p23, 0, %s22
    %s25 = sadd.s32 1, %s16
    %s26 = scalar_select %p23, %s25, %s16
    %p27 = scmp.ge.s32.totalorder %s26, 2
    %s28 = scalar_select %p27, 0, %s26
    %s29 = ssub.s32 %s16, %s28
    %s30 = ssub.s32 %s17, %s24
    %s31 = sor.u32 %s29, %s30
    %p32 = scmp.eq.s32.totalorder %s31, 0
    %s34 = sadd.s32 %s33, 1
    %s35 = scalar_select %p32, %s33, %s34
    %p38 = pneg %p32
    %p39 = scmp.eq.s32.totalorder %s9, 1
    %p40 = por %p38, %p39
    %p41 = scmp.ne.s32.totalorder %s33, %s36
    %p42 = scmp.eq.s32.totalorder %s9, 0
    %p43 = por %p41, %p42
    %p44 = scmp.ne.s32.totalorder %s33, %s36
    %p45 = scmp.eq.s32.totalorder %s14, 1
    %p46 = por %p44, %p45
    %p47 = scmp.ne.s32.totalorder %s36, %s37
    %p48 = scmp.eq.s32.totalorder %s14, 0
    %p49 = por %p47, %p48
    %p50 = scmp.ne.s32.totalorder %s36, %s37
    %p51 = scmp.eq.s32.totalorder %s15, 1
    %p52 = por %p50, %p51
    %p54 = scmp.ne.s32.totalorder %s37, %s53
    %p55 = scmp.eq.s32.totalorder %s15, 0
    %p56 = por %p54, %p55
    %s58 = sadd.s32 %s57, 1
    %p61 = scmp.eq.s32.totalorder %s9, 1
    %p62 = scmp.ne.s32.totalorder %s57, %s59
    %p63 = scmp.eq.s32.totalorder %s9, 0
    %p64 = por %p62, %p63
    %p65 = scmp.ne.s32.totalorder %s57, %s59
    %p66 = scmp.eq.s32.totalorder %s14, 1
    %p67 = por %p65, %p66
    %p68 = scmp.ne.s32.totalorder %s59, %s60
    %p69 = scmp.eq.s32.totalorder %s14, 0
    %p70 = por %p68, %p69
    %p71 = scmp.ne.s32.totalorder %s59, %s60
    %p72 = scmp.eq.s32.totalorder %s15, 1
    %p73 = por %p71, %p72
    %p75 = scmp.ne.s32.totalorder %s60, %s74
    %p76 = scmp.eq.s32.totalorder %s15, 0
    %p77 = por %p75, %p76
    %s79 = sadd.s32 %s78, 1
    %p82 = scmp.eq.s32.totalorder %s9, 1
    %p83 = scmp.ne.s32.totalorder %s78, %s80
    %p84 = scmp.eq.s32.totalorder %s9, 0
    %p85 = por %p83, %p84
    %p86 = scmp.ne.s32.totalorder %s78, %s80
    %p87 = scmp.eq.s32.totalorder %s14, 1
    %p88 = por %p86, %p87
    %p89 = scmp.ne.s32.totalorder %s80, %s81
    %p90 = scmp.eq.s32.totalorder %s14, 0
    %p91 = por %p89, %p90
    %p92 = scmp.ne.s32.totalorder %s80, %s81
    %p93 = scmp.eq.s32.totalorder %s15, 1
    %p94 = por %p92, %p93
    %p96 = scmp.ne.s32.totalorder %s81, %s95
    %p97 = scmp.eq.s32.totalorder %s15, 0
    %p98 = por %p96, %p97
    %s99 = ssub.s32 %s16, %s28
    %s100 = ssub.s32 %s17, %s24
    %s101 = sor.u32 %s99, %s100
    %p102 = scmp.eq.s32.totalorder %s101, 0
    %s104 = sadd.s32 %s103, 1
    %s105 = scalar_select %p102, %s103, %s104
    %p108 = pneg %p102
    %p109 = scmp.eq.s32.totalorder %s9, 1
    %p110 = por %p108, %p109
    %p111 = scmp.ne.s32.totalorder %s103, %s106
    %p112 = scmp.eq.s32.totalorder %s9, 0
    %p113 = por %p111, %p112
    %p114 = scmp.ne.s32.totalorder %s103, %s106
    %p115 = scmp.eq.s32.totalorder %s14, 1
    %p116 = por %p114, %p115
    %p117 = scmp.ne.s32.totalorder %s106, %s107
    %p118 = scmp.eq.s32.totalorder %s14, 0
    %p119 = por %p117, %p118
    %p120 = scmp.ne.s32.totalorder %s106, %s107
    %p121 = scmp.eq.s32.totalorder %s15, 1
    %p122 = por %p120, %p121
    %p124 = scmp.ne.s32.totalorder %s107, %s123
    %p125 = scmp.eq.s32.totalorder %s15, 0
    %p126 = por %p124, %p125
    %p127 = scmp.le.s32.totalorder 1, %s9
    %p128 = scmp.lt.s32.totalorder %s9, 3
    %p129 = pnand %p127, %p128
    %p130 = pneg %p129
    // Predicated region
    $region9: #{pff2pre_forward.2} parent=5 // pred_check
      _
    $region10: #{pff2pre_forward.2} parent=5 // pred_check_branch
      %132 = sbr.rel (%p129) target = $region12
    $region11: #{pff2pre_forward.2} parent=5 // pred_region
      %s133 = ssub.s32 %s9, 1
      // Predicated region
      $region13: #{pff2pre_forward.2} parent=11 // pred_check
        %p134 = pneg %p70
      $region14: #{pff2pre_forward.2} parent=11 // pred_check_branch
        %136 = sbr.rel (%p134) target = $region16
      $region15: #{pff2pre_forward.2} parent=11 // pred_region
        _
      $region16: #{pff2pre_forward.2} parent=11 // pred_fallthru
        _
      // Predicated region
      $region17: #{pff2pre_forward.2} parent=11 // pred_check
        %p137 = pneg %p91
      $region18: #{pff2pre_forward.2} parent=11 // pred_check_branch
        %139 = sbr.rel (%p137) target = $region20
      $region19: #{pff2pre_forward.2} parent=11 // pred_region
        _
      $region20: #{pff2pre_forward.2} parent=11 // pred_fallthru
        _
    $region12: #{pff2pre_forward.2} parent=5 // pred_fallthru
      _
    %p140 = scmp.lt.s32.totalorder %s9, 2
    // Predicated region
    $region21: #{pff2pre_forward.2} parent=5 // pred_check
      %p141 = pneg %p140
    $region22: #{pff2pre_forward.2} parent=5 // pred_check_branch
      %143 = sbr.rel (%p141) target = $region24
    $region23: #{pff2pre_forward.2} parent=5 // pred_region
      // Predicated region
      $region25: #{pff2pre_forward.2} parent=23 // pred_check
        %p144 = pneg %p43
      $region26: #{pff2pre_forward.2} parent=23 // pred_check_branch
        %146 = sbr.rel (%p144) target = $region28
      $region27: #{pff2pre_forward.2} parent=23 // pred_region
        %p147 = scmp.lt.s32.totalorder %s16, 1
        %s148 = scalar_select %p147, %s16, 1
        %p149 = scmp.lt.s32.totalorder %s17, 0
        %s150 = scalar_select %p149, %s17, 0
        %s151 = sadd.s32 %s150, %s148
        %s152 = smul.addr %s151, 4
        %s153 = scalar_lea.vmem %s0, %s152
      $region28: #{pff2pre_forward.2} parent=23 // pred_fallthru
        _
    $region24: #{pff2pre_forward.2} parent=5 // pred_fallthru
      _
    %p154 = scmp.le.s32.totalorder 1, %s9
    %p155 = scmp.lt.s32.totalorder %s9, 3
    %p156 = pnand %p154, %p155
    %p157 = pneg %p156
    // Predicated region
    $region29: #{pff2pre_forward.2} parent=5 // pred_check
      _
    $region30: #{pff2pre_forward.2} parent=5 // pred_check_branch
      %159 = sbr.rel (%p156) target = $region32
    $region31: #{pff2pre_forward.2} parent=5 // pred_region
      %s160 = ssub.s32 %s9, 1
      %p161 = scmp.lt.s32.totalorder %s18, 1
      %s162 = scalar_select %p161, %s18, 1
      %p163 = scmp.lt.s32.totalorder %s19, 0
      %s164 = scalar_select %p163, %s19, 0
      %s165 = sadd.s32 %s164, %s162
      %s166 = smul.addr %s165, 4
      %s167 = scalar_lea.vmem %s0, %s166
      %p168 = pneg %p49
      %p169 = pneg %p46
      %p170 = pneg %p70
      %p171 = pneg %p67
      %p172 = pneg %p91
      %p173 = pneg %p88
      %p174 = pneg %p119
      %p175 = pneg %p116
      %p176 = scmp.lt.s32.totalorder %s18, 1
      %s177 = scalar_select %p176, %s18, 1
      %p178 = scmp.lt.s32.totalorder %s19, 0
      %s179 = scalar_select %p178, %s19, 0
      %s180 = sadd.s32 %s179, %s177
      %s181 = smul.addr %s180, 4
      %s182 = scalar_lea.vmem %s3, %s181
      %p183 = scmp.lt.s32.totalorder %s18, 1
      %s184 = scalar_select %p183, %s18, 1
      %p185 = scmp.lt.s32.totalorder %s19, 0
      %s186 = scalar_select %p185, %s19, 0
      %s187 = sadd.s32 %s186, %s184
      %s188 = smul.addr %s187, 4
      %s189 = scalar_lea.vmem %s0, %s188
      %p190 = scmp.lt.s32.totalorder %s18, 1
      %s191 = scalar_select %p190, %s18, 1
      %p192 = scmp.lt.s32.totalorder %s19, 0
      %s193 = scalar_select %p192, %s19, 0
      %s194 = sadd.s32 %s193, %s191
      %s195 = smul.addr %s194, 4
      %s196 = scalar_lea.vmem %s3, %s195
      %v197 = vld [vmem:[%s1] sm:$0xf]
      %v198 = vld [vmem:[%s189] sm:$0xf]
      %v199 = vld [vmem:[%s2] sm:$0xf]
      %201 = vset.pattern.permute.xlu0 0
      %202 = vperm.xlu0 %201, %v199
      %v203 = vpop.permute.xlu0 %202
      %vm205 = vcmask 31744
      %v207 = vsel %vm205, %v197, 0
      %vm209 = vcmask 1043456
      %v211 = vsel %vm209, %v198, 0
      %213 = vmatpush.msra.mxu0 0.0
      %214 = vmatpush.msra.mxu0 0.0
      %215 = vmatpush.msra.mxu0 0.0
      %216 = vmatpush.msra.mxu0 0.0
      %217 = vmatpush.msra.mxu0 0.0
      %218 = vmatpush.msra.mxu0 0.0
      %219 = vmatpush.msra.mxu0 0.0
      %220 = vmatpush.msra.mxu0 0.0
      %221 = vmatpush.msra.mxu0 0.0
      %222 = vmatpush.msra.mxu0 0.0
      %223 = vmatpush.msra.mxu0 0.0
      %224 = vmatpush.msra.mxu0 0.0
      %225 = vmatpush.msra.mxu0 0.0
      %226 = vmatpush.msra.mxu0 0.0
      %227 = vmatpush.msra.mxu0 0.0
      %228 = vmatpush.msra.mxu0 %v211
      %229 = vmatmul.f32.gmra.mxu0 %v207
      %v230 = vpop.f32.mrf.mxu0
      %v231 = vadd.f32 %v203, %v230
      %232 = vdwg.mxu0
      %vm233 = vcmask 519168
      %234 = vst.msk [vmem:[%s196] sm:$0xf] %vm233, %v231
      %p235 = scmp.lt.s32.totalorder %s18, 1
      %s236 = scalar_select %p235, %s18, 1
      %p237 = scmp.lt.s32.totalorder %s19, 0
      %s238 = scalar_select %p237, %s19, 0
      %s239 = sadd.s32 %s238, %s236
      %s240 = smul.addr %s239, 4
      %s241 = scalar_lea.vmem %s3, %s240
      // Predicated region
      $region33: #{pff2pre_forward.2} parent=31 // pred_check
        %p242 = pneg %p116
      $region34: #{pff2pre_forward.2} parent=31 // pred_check_branch
        %244 = sbr.rel (%p242) target = $region36
      $region35: #{pff2pre_forward.2} parent=31 // pred_region
        _
      $region36: #{pff2pre_forward.2} parent=31 // pred_fallthru
        _
    $region32: #{pff2pre_forward.2} parent=5 // pred_fallthru
      _
    %p245 = scmp.le.s32.totalorder 2, %s9
    // Predicated region
    $region37: #{pff2pre_forward.2} parent=5 // pred_check
      %p246 = pneg %p245
    $region38: #{pff2pre_forward.2} parent=5 // pred_check_branch
      %248 = sbr.rel (%p246) target = $region40
    $region39: #{pff2pre_forward.2} parent=5 // pred_region
      %s249 = ssub.s32 %s9, 2
      // Predicated region
      $region41: #{pff2pre_forward.2} parent=39 // pred_check
        %p250 = pneg %p122
      $region42: #{pff2pre_forward.2} parent=39 // pred_check_branch
        %252 = sbr.rel (%p250) target = $region44
      $region43: #{pff2pre_forward.2} parent=39 // pred_region
        %p253 = scmp.lt.s32.totalorder %s20, 1
        %s254 = scalar_select %p253, %s20, 1
        %p255 = scmp.lt.s32.totalorder %s21, 0
        %s256 = scalar_select %p255, %s21, 0
        %s257 = sadd.s32 %s256, %s254
        %s258 = smul.addr %s257, 4
        %s259 = scalar_lea.vmem %s3, %s258
      $region44: #{pff2pre_forward.2} parent=39 // pred_fallthru
        _
    $region40: #{pff2pre_forward.2} parent=5 // pred_fallthru
      _
  $region6: #{pff2pre_forward.2} parent=0 // loop_footer
    %s13 = sadd.s32 1, %s9
  $region7: #{pff2pre_forward.2} parent=0 // loop_footer_branch
    %8 = sbr.rel target = $region3
  $region8: #{pff2pre_forward.2} parent=0 // loop_exit
    _

// kernel: pff2pre_forward.3
$region0: #{pff2pre_forward.3}
  #allocation0 [shape = 'u32[]', space=smem, size = 0x4, offset = 0x4, fixed_abs, tag = 'smem constant byte address 0x4 - core index']
  #allocation1 [shape = 'u32[72,128]{1,0:T(1,128)}', space=vmem, size = 0x9000, scoped, tag = 'internal scratch']
  %s0 = inlined_call_operand.vmem [shape: f32[2,4,256], index: 0, kind: input, shape index: {}]
  %s1 = inlined_call_operand.vmem [shape: f32[2,4,256], index: 1, kind: input, shape index: {}]
  %s2 = inlined_call_operand.vmem [shape: f32[2,8,1], index: 2, kind: input, shape index: {}]
  %s3 = inlined_call_operand.vmem [shape: f32[8,8], index: 3, kind: input, shape index: {}]
  %s4 = inlined_call_operand.vmem [shape: f32[8,1], index: 4, kind: input, shape index: {}]
  %s5 = inlined_call_operand.vmem [shape: f32[4,8], index: 5, kind: input, shape index: {}]
  %s6 = inlined_call_operand.vmem [shape: f32[4,1], index: 6, kind: input, shape index: {}]
  %s7 = inlined_call_operand.vmem [shape: f32[2,4,256], index: 7, kind: output, shape index: {}]
  %s8 = sld [smem:[#allocation0]]
  $region61: #{pff2pre_forward.3} parent=0
    _
  %s10 = ssub.s32 1, %s8
  %s11 = scalar_select 0, %s10, %s8
  loop: start=0, step=1, limit=4
  $region2: #{pff2pre_forward.3} parent=0 // loop_pre_header
    _
  $region3: #{pff2pre_forward.3} parent=0 // loop_header
    %s13 = sphi 0, %s17
    %p14 = scmp.ge.s32.totalorder %s13, 4
    %s20 = sphi 0, %s32
    %s21 = sphi 0, %s28
    %s22 = sphi 0, %s20
    %s23 = sphi 0, %s21
    %s24 = sphi 0, %s22
    %s25 = sphi 0, %s23
    %s37 = sphi 0, %s39
    %s40 = sphi 0, %s37
    %s41 = sphi 0, %s40
    %s57 = sphi 0, %s41
    %s65 = sphi 0, %s67
    %s68 = sphi 0, %s65
    %s69 = sphi 0, %s68
    %s85 = sphi 0, %s69
    %s91 = sphi 0, %s93
    %s94 = sphi 0, %s91
    %s95 = sphi 0, %s94
    %s111 = sphi 0, %s95
    %s115 = sphi 0, %s115
    %s117 = sphi 0, %s115
    %s118 = sphi 0, %s117
    %s132 = sphi 0, %s118
    %s136 = sphi 0, %s136
    %s138 = sphi 0, %s136
    %s139 = sphi 0, %s138
    %s153 = sphi 0, %s139
    %s157 = sphi 0, %s157
    %s159 = sphi 0, %s157
    %s160 = sphi 0, %s159
    %s174 = sphi 0, %s160
    %s178 = sphi 0, %s178
    %s180 = sphi 0, %s178
    %s181 = sphi 0, %s180
    %s195 = sphi 0, %s181
    %s203 = sphi 0, %s205
    %s206 = sphi 0, %s203
    %s207 = sphi 0, %s206
    %s223 = sphi 0, %s207
  $region4: #{pff2pre_forward.3} parent=0 // loop_header_branch
    %16 = sbr.rel (%p14) target = $region8
  $region5: #{pff2pre_forward.3} parent=0 // loop_body
    %s18 = ssub.s32 %s13, 1
    %s19 = ssub.s32 %s13, 2
    %s26 = sadd.s32 1, %s21
    %p27 = scmp.ge.s32.totalorder %s26, 1
    %s28 = scalar_select %p27, 0, %s26
    %s29 = sadd.s32 1, %s20
    %s30 = scalar_select %p27, %s29, %s20
    %p31 = scmp.ge.s32.totalorder %s30, 2
    %s32 = scalar_select %p31, 0, %s30
    %s33 = ssub.s32 %s20, %s32
    %s34 = ssub.s32 %s21, %s28
    %s35 = sor.u32 %s33, %s34
    %p36 = scmp.eq.s32.totalorder %s35, 0
    %s38 = sadd.s32 %s37, 1
    %s39 = scalar_select %p36, %s37, %s38
    %p42 = pneg %p36
    %p43 = scmp.eq.s32.totalorder %s13, 1
    %p44 = por %p42, %p43
    %p45 = scmp.ne.s32.totalorder %s37, %s40
    %p46 = scmp.eq.s32.totalorder %s13, 0
    %p47 = por %p45, %p46
    %p48 = scmp.ne.s32.totalorder %s37, %s40
    %p49 = scmp.eq.s32.totalorder %s18, 1
    %p50 = por %p48, %p49
    %p51 = scmp.ne.s32.totalorder %s40, %s41
    %p52 = scmp.eq.s32.totalorder %s18, 0
    %p53 = por %p51, %p52
    %p54 = scmp.ne.s32.totalorder %s40, %s41
    %p55 = scmp.eq.s32.totalorder %s19, 1
    %p56 = por %p54, %p55
    %p58 = scmp.ne.s32.totalorder %s41, %s57
    %p59 = scmp.eq.s32.totalorder %s19, 0
    %p60 = por %p58, %p59
    %s61 = ssub.s32 %s20, %s32
    %s62 = ssub.s32 %s21, %s28
    %s63 = sor.u32 %s61, %s62
    %p64 = scmp.eq.s32.totalorder %s63, 0
    %s66 = sadd.s32 %s65, 1
    %s67 = scalar_select %p64, %s65, %s66
    %p70 = pneg %p64
    %p71 = scmp.eq.s32.totalorder %s13, 1
    %p72 = por %p70, %p71
    %p73 = scmp.ne.s32.totalorder %s65, %s68
    %p74 = scmp.eq.s32.totalorder %s13, 0
    %p75 = por %p73, %p74
    %p76 = scmp.ne.s32.totalorder %s65, %s68
    %p77 = scmp.eq.s32.totalorder %s18, 1
    %p78 = por %p76, %p77
    %p79 = scmp.ne.s32.totalorder %s68, %s69
    %p80 = scmp.eq.s32.totalorder %s18, 0
    %p81 = por %p79, %p80
    %p82 = scmp.ne.s32.totalorder %s68, %s69
    %p83 = scmp.eq.s32.totalorder %s19, 1
    %p84 = por %p82, %p83
    %p86 = scmp.ne.s32.totalorder %s69, %s85
    %p87 = scmp.eq.s32.totalorder %s19, 0
    %p88 = por %p86, %p87
    %s89 = ssub.s32 %s20, %s32
    %p90 = scmp.eq.s32.totalorder %s89, 0
    %s92 = sadd.s32 %s91, 1
    %s93 = scalar_select %p90, %s91, %s92
    %p96 = pneg %p90
    %p97 = scmp.eq.s32.totalorder %s13, 1
    %p98 = por %p96, %p97
    %p99 = scmp.ne.s32.totalorder %s91, %s94
    %p100 = scmp.eq.s32.totalorder %s13, 0
    %p101 = por %p99, %p100
    %p102 = scmp.ne.s32.totalorder %s91, %s94
    %p103 = scmp.eq.s32.totalorder %s18, 1
    %p104 = por %p102, %p103
    %p105 = scmp.ne.s32.totalorder %s94, %s95
    %p106 = scmp.eq.s32.totalorder %s18, 0
    %p107 = por %p105, %p106
    %p108 = scmp.ne.s32.totalorder %s94, %s95
    %p109 = scmp.eq.s32.totalorder %s19, 1
    %p110 = por %p108, %p109
    %p112 = scmp.ne.s32.totalorder %s95, %s111
    %p113 = scmp.eq.s32.totalorder %s19, 0
    %p114 = por %p112, %p113
    %s116 = sadd.s32 %s115, 1
    %p119 = scmp.eq.s32.totalorder %s13, 1
    %p120 = scmp.ne.s32.totalorder %s115, %s117
    %p121 = scmp.eq.s32.totalorder %s13, 0
    %p122 = por %p120, %p121
    %p123 = scmp.ne.s32.totalorder %s115, %s117
    %p124 = scmp.eq.s32.totalorder %s18, 1
    %p125 = por %p123, %p124
    %p126 = scmp.ne.s32.totalorder %s117, %s118
    %p127 = scmp.eq.s32.totalorder %s18, 0
    %p128 = por %p126, %p127
    %p129 = scmp.ne.s32.totalorder %s117, %s118
    %p130 = scmp.eq.s32.totalorder %s19, 1
    %p131 = por %p129, %p130
    %p133 = scmp.ne.s32.totalorder %s118, %s132
    %p134 = scmp.eq.s32.totalorder %s19, 0
    %p135 = por %p133, %p134
    %s137 = sadd.s32 %s136, 1
    %p140 = scmp.eq.s32.totalorder %s13, 1
    %p141 = scmp.ne.s32.totalorder %s136, %s138
    %p142 = scmp.eq.s32.totalorder %s13, 0
    %p143 = por %p141, %p142
    %p144 = scmp.ne.s32.totalorder %s136, %s138
    %p145 = scmp.eq.s32.totalorder %s18, 1
    %p146 = por %p144, %p145
    %p147 = scmp.ne.s32.totalorder %s138, %s139
    %p148 = scmp.eq.s32.totalorder %s18, 0
    %p149 = por %p147, %p148
    %p150 = scmp.ne.s32.totalorder %s138, %s139
    %p151 = scmp.eq.s32.totalorder %s19, 1
    %p152 = por %p150, %p151
    %p154 = scmp.ne.s32.totalorder %s139, %s153
    %p155 = scmp.eq.s32.totalorder %s19, 0
    %p156 = por %p154, %p155
    %s158 = sadd.s32 %s157, 1
    %p161 = scmp.eq.s32.totalorder %s13, 1
    %p162 = scmp.ne.s32.totalorder %s157, %s159
    %p163 = scmp.eq.s32.totalorder %s13, 0
    %p164 = por %p162, %p163
    %p165 = scmp.ne.s32.totalorder %s157, %s159
    %p166 = scmp.eq.s32.totalorder %s18, 1
    %p167 = por %p165, %p166
    %p168 = scmp.ne.s32.totalorder %s159, %s160
    %p169 = scmp.eq.s32.totalorder %s18, 0
    %p170 = por %p168, %p169
    %p171 = scmp.ne.s32.totalorder %s159, %s160
    %p172 = scmp.eq.s32.totalorder %s19, 1
    %p173 = por %p171, %p172
    %p175 = scmp.ne.s32.totalorder %s160, %s174
    %p176 = scmp.eq.s32.totalorder %s19, 0
    %p177 = por %p175, %p176
    %s179 = sadd.s32 %s178, 1
    %p182 = scmp.eq.s32.totalorder %s13, 1
    %p183 = scmp.ne.s32.totalorder %s178, %s180
    %p184 = scmp.eq.s32.totalorder %s13, 0
    %p185 = por %p183, %p184
    %p186 = scmp.ne.s32.totalorder %s178, %s180
    %p187 = scmp.eq.s32.totalorder %s18, 1
    %p188 = por %p186, %p187
    %p189 = scmp.ne.s32.totalorder %s180, %s181
    %p190 = scmp.eq.s32.totalorder %s18, 0
    %p191 = por %p189, %p190
    %p192 = scmp.ne.s32.totalorder %s180, %s181
    %p193 = scmp.eq.s32.totalorder %s19, 1
    %p194 = por %p192, %p193
    %p196 = scmp.ne.s32.totalorder %s181, %s195
    %p197 = scmp.eq.s32.totalorder %s19, 0
    %p198 = por %p196, %p197
    %s199 = ssub.s32 %s20, %s32
    %s200 = ssub.s32 %s21, %s28
    %s201 = sor.u32 %s199, %s200
    %p202 = scmp.eq.s32.totalorder %s201, 0
    %s204 = sadd.s32 %s203, 1
    %s205 = scalar_select %p202, %s203, %s204
    %p208 = pneg %p202
    %p209 = scmp.eq.s32.totalorder %s13, 1
    %p210 = por %p208, %p209
    %p211 = scmp.ne.s32.totalorder %s203, %s206
    %p212 = scmp.eq.s32.totalorder %s13, 0
    %p213 = por %p211, %p212
    %p214 = scmp.ne.s32.totalorder %s203, %s206
    %p215 = scmp.eq.s32.totalorder %s18, 1
    %p216 = por %p214, %p215
    %p217 = scmp.ne.s32.totalorder %s206, %s207
    %p218 = scmp.eq.s32.totalorder %s18, 0
    %p219 = por %p217, %p218
    %p220 = scmp.ne.s32.totalorder %s206, %s207
    %p221 = scmp.eq.s32.totalorder %s19, 1
    %p222 = por %p220, %p221
    %p224 = scmp.ne.s32.totalorder %s207, %s223
    %p225 = scmp.eq.s32.totalorder %s19, 0
    %p226 = por %p224, %p225
    %p227 = scmp.le.s32.totalorder 1, %s13
    %p228 = scmp.lt.s32.totalorder %s13, 3
    %p229 = pnand %p227, %p228
    %p230 = pneg %p229
    // Predicated region
    $region9: #{pff2pre_forward.3} parent=5 // pred_check
      _
    $region10: #{pff2pre_forward.3} parent=5 // pred_check_branch
      %232 = sbr.rel (%p229) target = $region12
    $region11: #{pff2pre_forward.3} parent=5 // pred_region
      %s233 = ssub.s32 %s13, 1
      // Predicated region
      $region13: #{pff2pre_forward.3} parent=11 // pred_check
        %p234 = pneg %p128
      $region14: #{pff2pre_forward.3} parent=11 // pred_check_branch
        %236 = sbr.rel (%p234) target = $region16
      $region15: #{pff2pre_forward.3} parent=11 // pred_region
        _
      $region16: #{pff2pre_forward.3} parent=11 // pred_fallthru
        _
      // Predicated region
      $region17: #{pff2pre_forward.3} parent=11 // pred_check
        %p237 = pneg %p149
      $region18: #{pff2pre_forward.3} parent=11 // pred_check_branch
        %239 = sbr.rel (%p237) target = $region20
      $region19: #{pff2pre_forward.3} parent=11 // pred_region
        _
      $region20: #{pff2pre_forward.3} parent=11 // pred_fallthru
        _
      // Predicated region
      $region21: #{pff2pre_forward.3} parent=11 // pred_check
        %p240 = pneg %p170
      $region22: #{pff2pre_forward.3} parent=11 // pred_check_branch
        %242 = sbr.rel (%p240) target = $region24
      $region23: #{pff2pre_forward.3} parent=11 // pred_region
        _
      $region24: #{pff2pre_forward.3} parent=11 // pred_fallthru
        _
      // Predicated region
      $region25: #{pff2pre_forward.3} parent=11 // pred_check
        %p243 = pneg %p191
      $region26: #{pff2pre_forward.3} parent=11 // pred_check_branch
        %245 = sbr.rel (%p243) target = $region28
      $region27: #{pff2pre_forward.3} parent=11 // pred_region
        _
      $region28: #{pff2pre_forward.3} parent=11 // pred_fallthru
        _
    $region12: #{pff2pre_forward.3} parent=5 // pred_fallthru
      _
    %p246 = scmp.lt.s32.totalorder %s13, 2
    // Predicated region
    $region29: #{pff2pre_forward.3} parent=5 // pred_check
      %p247 = pneg %p246
    $region30: #{pff2pre_forward.3} parent=5 // pred_check_branch
      %249 = sbr.rel (%p247) target = $region32
    $region31: #{pff2pre_forward.3} parent=5 // pred_region
      // Predicated region
      $region33: #{pff2pre_forward.3} parent=31 // pred_check
        %p250 = pneg %p47
      $region34: #{pff2pre_forward.3} parent=31 // pred_check_branch
        %252 = sbr.rel (%p250) target = $region36
      $region35: #{pff2pre_forward.3} parent=31 // pred_region
        %s253 = smul.u32 2, %s21
        %p254 = scmp.lt.s32.totalorder %s20, 1
        %s255 = scalar_select %p254, %s20, 1
        %p256 = scmp.lt.s32.totalorder %s253, 1
        %s257 = scalar_select %p256, %s253, 1
        %s258 = smul.addr %s255, 2
        %s259 = sadd.s32 %s257, %s258
        %s260 = smul.addr %s259, 4
        %s261 = scalar_lea.vmem %s0, %s260
        %s262 = smul.u32 2, %s21
      $region36: #{pff2pre_forward.3} parent=31 // pred_fallthru
        _
      // Predicated region
      $region37: #{pff2pre_forward.3} parent=31 // pred_check
        %p263 = pneg %p75
      $region38: #{pff2pre_forward.3} parent=31 // pred_check_branch
        %265 = sbr.rel (%p263) target = $region40
      $region39: #{pff2pre_forward.3} parent=31 // pred_region
        %s266 = smul.u32 2, %s21
        %p267 = scmp.lt.s32.totalorder %s20, 1
        %s268 = scalar_select %p267, %s20, 1
        %p269 = scmp.lt.s32.totalorder %s266, 1
        %s270 = scalar_select %p269, %s266, 1
        %s271 = smul.addr %s268, 2
        %s272 = sadd.s32 %s270, %s271
        %s273 = smul.addr %s272, 4
        %s274 = scalar_lea.vmem %s1, %s273
        %s275 = smul.u32 2, %s21
      $region40: #{pff2pre_forward.3} parent=31 // pred_fallthru
        _
      // Predicated region
      $region41: #{pff2pre_forward.3} parent=31 // pred_check
        %p276 = pneg %p101
      $region42: #{pff2pre_forward.3} parent=31 // pred_check_branch
        %278 = sbr.rel (%p276) target = $region44
      $region43: #{pff2pre_forward.3} parent=31 // pred_region
        %p279 = scmp.lt.s32.totalorder %s20, 1
        %s280 = scalar_select %p279, %s20, 1
        %s281 = smul.addr %s280, 8
        %s282 = scalar_lea.vmem %s2, %s281
      $region44: #{pff2pre_forward.3} parent=31 // pred_fallthru
        _
    $region32: #{pff2pre_forward.3} parent=5 // pred_fallthru
      _
    %p283 = scmp.le.s32.totalorder 1, %s13
    %p284 = scmp.lt.s32.totalorder %s13, 3
    %p285 = pnand %p283, %p284
    %p286 = pneg %p285
    // Predicated region
    $region45: #{pff2pre_forward.3} parent=5 // pred_check
      _
    $region46: #{pff2pre_forward.3} parent=5 // pred_check_branch
      %288 = sbr.rel (%p285) target = $region48
    $region47: #{pff2pre_forward.3} parent=5 // pred_region
      %s289 = ssub.s32 %s13, 1
      %s290 = smul.u32 2, %s23
      %p291 = scmp.lt.s32.totalorder %s22, 1
      %s292 = scalar_select %p291, %s22, 1
      %p293 = scmp.lt.s32.totalorder %s290, 1
      %s294 = scalar_select %p293, %s290, 1
      %s295 = smul.addr %s292, 2
      %s296 = sadd.s32 %s294, %s295
      %s297 = smul.addr %s296, 4
      %s298 = scalar_lea.vmem %s0, %s297
      %p299 = pneg %p53
      %p300 = pneg %p50
      %s301 = smul.u32 2, %s23
      %p302 = scmp.lt.s32.totalorder %s22, 1
      %s303 = scalar_select %p302, %s22, 1
      %p304 = scmp.lt.s32.totalorder %s301, 1
      %s305 = scalar_select %p304, %s301, 1
      %s306 = smul.addr %s303, 2
      %s307 = sadd.s32 %s305, %s306
      %s308 = smul.addr %s307, 4
      %s309 = scalar_lea.vmem %s1, %s308
      %p310 = pneg %p81
      %p311 = pneg %p78
      %p312 = scmp.lt.s32.totalorder %s22, 1
      %s313 = scalar_select %p312, %s22, 1
      %s314 = smul.addr %s313, 8
      %s315 = scalar_lea.vmem %s2, %s314
      %p316 = pneg %p107
      %p317 = pneg %p104
      %p318 = pneg %p128
      %p319 = pneg %p125
      %p320 = pneg %p149
      %p321 = pneg %p146
      %p322 = pneg %p170
      %p323 = pneg %p167
      %p324 = pneg %p191
      %p325 = pneg %p188
      %p326 = pneg %p219
      %p327 = pneg %p216
      %s328 = smul.u32 2, %s23
      %p329 = scmp.lt.s32.totalorder %s22, 1
      %s330 = scalar_select %p329, %s22, 1
      %p331 = scmp.lt.s32.totalorder %s328, 1
      %s332 = scalar_select %p331, %s328, 1
      %s333 = smul.addr %s330, 2
      %s334 = sadd.s32 %s332, %s333
      %s335 = smul.addr %s334, 4
      %s336 = scalar_lea.vmem %s7, %s335
      %s337 = smul.u32 2, %s23
      %p338 = scmp.lt.s32.totalorder %s22, 1
      %s339 = scalar_select %p338, %s22, 1
      %p340 = scmp.lt.s32.totalorder %s337, 1
      %s341 = scalar_select %p340, %s337, 1
      %s342 = smul.addr %s339, 2
      %s343 = sadd.s32 %s341, %s342
      %s344 = smul.addr %s343, 4
      %s345 = scalar_lea.vmem %s0, %s344
      %s346 = smul.u32 2, %s23
      %s347 = smul.u32 2, %s23
      %p348 = scmp.lt.s32.totalorder %s22, 1
      %s349 = scalar_select %p348, %s22, 1
      %p350 = scmp.lt.s32.totalorder %s347, 1
      %s351 = scalar_select %p350, %s347, 1
      %s352 = smul.addr %s349, 2
      %s353 = sadd.s32 %s351, %s352
      %s354 = smul.addr %s353, 4
      %s355 = scalar_lea.vmem %s1, %s354
      %s356 = smul.u32 2, %s23
      %p357 = scmp.lt.s32.totalorder %s22, 1
      %s358 = scalar_select %p357, %s22, 1
      %s359 = smul.addr %s358, 8
      %s360 = scalar_lea.vmem %s2, %s359
      %s361 = smul.u32 2, %s23
      %p362 = scmp.lt.s32.totalorder %s22, 1
      %s363 = scalar_select %p362, %s22, 1
      %p364 = scmp.lt.s32.totalorder %s361, 1
      %s365 = scalar_select %p364, %s361, 1
      %s366 = smul.addr %s363, 2
      %s367 = sadd.s32 %s365, %s366
      %s368 = smul.addr %s367, 4
      %s369 = scalar_lea.vmem %s7, %s368
      %s370 = smul.u32 2, %s23
      %v371 = vld [vmem:[%s345] sm:$0xff]
      %v372 = vld [vmem:[%s355] sm:$0xff]
      %v373 = vmul.f32 %v371, %v372
      %375 = vst [vmem:[#allocation1] ss:$2 sm:$0xff] %v371
      %v376 = vld.sshfl [vmem:[#allocation1] sm:$0xff pattern:$0x75316420]
      %v377 = vld.sshfl [vmem:[#allocation1 + $0x8] sm:$0xff pattern:$0x75316420]
      %s381 = scalar_lea.vmem [#allocation1], 1
      %382 = vst [vmem:[%s381] ss:$2 sm:$0xff] %v373
      %v383 = vld.sshfl [vmem:[#allocation1] sm:$0xff pattern:$0x75316420]
      %v384 = vld.sshfl [vmem:[#allocation1 + $0x8] sm:$0xff pattern:$0x75316420]
      %vm387 = vcmask 1043456
      %v388 = vsel %vm387, %v376, %v383
      %v389 = vsel %vm387, %v377, %v384
      %v390 = vld [vmem:[%s3] sm:$0xff]
      %v391 = vld [vmem:[%s4] sm:$0xff]
      %393 = vset.pattern.permute.xlu0 0
      %394 = vperm.xlu0 %393, %v391
      %v395 = vpop.permute.xlu0 %394
      %vm397 = vcmask 64512
      %v399 = vsel %vm397, %v390, 0
      %401 = vmatpush.msra.mxu0 0.0
      %402 = vmatpush.msra.mxu0 0.0
      %403 = vmatpush.msra.mxu0 0.0
      %404 = vmatpush.msra.mxu0 0.0
      %405 = vmatpush.msra.mxu0 0.0
      %406 = vmatpush.msra.mxu0 0.0
      %407 = vmatpush.msra.mxu0 0.0
      %408 = vmatpush.msra.mxu0 0.0
      %409 = vmatpush.msra.mxu0 0.0
      %410 = vmatpush.msra.mxu0 0.0
      %411 = vmatpush.msra.mxu0 0.0
      %412 = vmatpush.msra.mxu0 0.0
      %413 = vmatpush.msra.mxu0 0.0
      %414 = vmatpush.msra.mxu0 0.0
      %415 = vmatpush.msra.mxu0 0.0
      %416 = vmatpush.msra.mxu0 %v388
      %417 = vmatmul.f32.gmra.mxu0 %v399
      %v418 = vpop.f32.mrf.mxu0
      %v419 = vadd.f32 %v395, %v418
      %420 = vdwg.mxu0
      %421 = vmatpush.msra.mxu0 0.0
      %422 = vmatpush.msra.mxu0 0.0
      %423 = vmatpush.msra.mxu0 0.0
      %424 = vmatpush.msra.mxu0 0.0
      %425 = vmatpush.msra.mxu0 0.0
      %426 = vmatpush.msra.mxu0 0.0
      %427 = vmatpush.msra.mxu0 0.0
      %428 = vmatpush.msra.mxu0 0.0
      %429 = vmatpush.msra.mxu0 0.0
      %430 = vmatpush.msra.mxu0 0.0
      %431 = vmatpush.msra.mxu0 0.0
      %432 = vmatpush.msra.mxu0 0.0
      %433 = vmatpush.msra.mxu0 0.0
      %434 = vmatpush.msra.mxu0 0.0
      %435 = vmatpush.msra.mxu0 0.0
      %436 = vmatpush.msra.mxu0 %v389
      %437 = vmatmul.f32.gmra.mxu0 %v399
      %v438 = vpop.f32.mrf.mxu0
      %v439 = vadd.f32 %v395, %v438
      %440 = vdwg.mxu0
      %v441 = vld [vmem:[%s360] sm:$0xff]
      %v442 = vxor.u32 %v419, 2147483648
      %v443 = vxor.u32 %v439, 2147483648
      %v444 = vmul.f32 %v442, 1.442695
      %v445 = vpow.pop %v444
      %v446 = vmul.f32 %v443, 1.442695
      %v447 = vpow.pop %v446
      %v448 = vadd.f32 %v445, 1.0
      %v449 = vadd.f32 %v447, 1.0
      %v450 = vrcp.pop %v448
      %v451 = vmul.f32 %v448, %v450
      %v452 = vsub.f32 1.0, %v451
      %v453 = vmul.f32 %v450, %v452
      %v454 = vadd.f32 %v450, %v453
      %vm455 = vweird.f32 %v448
      %vm456 = vweird.f32 %v450
      %vm457 = vmor %vm455, %vm456
      %v458 = vsel %vm457, %v450, %v454
      %v459 = vand.u32 2147483647, %v448
      %vm460 = vcmp.eq.f32.partialorder %v459, 8.507059e+37
      %v461 = vand.u32 %v448, 2147483648
      %v462 = vor.u32 1.1754944e-38, %v461
      %v463 = vsel %vm460, %v462, %v458
      %v464 = vmul.f32 1.0, %v463
      %v465 = vrcp.pop %v449
      %v466 = vmul.f32 %v449, %v465
      %v467 = vsub.f32 1.0, %v466
      %v468 = vmul.f32 %v465, %v467
      %v469 = vadd.f32 %v465, %v468
      %vm470 = vweird.f32 %v449
      %vm471 = vweird.f32 %v465
      %vm472 = vmor %vm470, %vm471
      %v473 = vsel %vm472, %v465, %v469
      %v474 = vand.u32 2147483647, %v449
      %vm475 = vcmp.eq.f32.partialorder %v474, 8.507059e+37
      %v476 = vand.u32 %v449, 2147483648
      %v477 = vor.u32 1.1754944e-38, %v476
      %v478 = vsel %vm475, %v477, %v473
      %v479 = vmul.f32 1.0, %v478
      %481 = vset.pattern.permute.xlu0 0
      %482 = vperm.xlu0 %481, %v441
      %v483 = vpop.permute.xlu0 %482
      %v485 = vadd.f32 %v483, %v464
      %v486 = vadd.f32 %v483, %v479
      %v487 = vmul.f32 %v388, %v485
      %v488 = vmul.f32 %v389, %v486
      %v489 = vld [vmem:[%s5] sm:$0xf]
      %v490 = vld [vmem:[%s6] sm:$0xf]
      %492 = vset.pattern.permute.xlu0 0
      %493 = vperm.xlu0 %492, %v490
      %v494 = vpop.permute.xlu0 %493
      %v497 = vsel %vm397, %v489, 0
      %499 = vmatpush.msra.mxu0 0.0
      %500 = vmatpush.msra.mxu0 0.0
      %501 = vmatpush.msra.mxu0 0.0
      %502 = vmatpush.msra.mxu0 0.0
      %503 = vmatpush.msra.mxu0 0.0
      %504 = vmatpush.msra.mxu0 0.0
      %505 = vmatpush.msra.mxu0 0.0
      %506 = vmatpush.msra.mxu0 0.0
      %507 = vmatpush.msra.mxu0 0.0
      %508 = vmatpush.msra.mxu0 0.0
      %509 = vmatpush.msra.mxu0 0.0
      %510 = vmatpush.msra.mxu0 0.0
      %511 = vmatpush.msra.mxu0 0.0
      %512 = vmatpush.msra.mxu0 0.0
      %513 = vmatpush.msra.mxu0 0.0
      %514 = vmatpush.msra.mxu0 %v487
      %515 = vmatmul.f32.gmra.mxu0 %v497
      %v516 = vpop.f32.mrf.mxu0
      %v517 = vadd.f32 %v494, %v516
      %518 = vdwg.mxu0
      %519 = vmatpush.msra.mxu0 0.0
      %520 = vmatpush.msra.mxu0 0.0
      %521 = vmatpush.msra.mxu0 0.0
      %522 = vmatpush.msra.mxu0 0.0
      %523 = vmatpush.msra.mxu0 0.0
      %524 = vmatpush.msra.mxu0 0.0
      %525 = vmatpush.msra.mxu0 0.0
      %526 = vmatpush.msra.mxu0 0.0
      %527 = vmatpush.msra.mxu0 0.0
      %528 = vmatpush.msra.mxu0 0.0
      %529 = vmatpush.msra.mxu0 0.0
      %530 = vmatpush.msra.mxu0 0.0
      %531 = vmatpush.msra.mxu0 0.0
      %532 = vmatpush.msra.mxu0 0.0
      %533 = vmatpush.msra.mxu0 0.0
      %534 = vmatpush.msra.mxu0 %v488
      %535 = vmatmul.f32.gmra.mxu0 %v497
      %v536 = vpop.f32.mrf.mxu0
      %v537 = vadd.f32 %v494, %v536
      %538 = vdwg.mxu0
      %v539 = vmax.f32 %v517, 0.0
      %v540 = vmax.f32 %v537, 0.0
      %v543 = vrot.slane %v540, 4
      %v544 = vsel %vm387, %v539, %v543
      %546 = vst [vmem:[%s369] sm:$0xff] %v544
      %s547 = smul.u32 2, %s23
      %p548 = scmp.lt.s32.totalorder %s22, 1
      %s549 = scalar_select %p548, %s22, 1
      %p550 = scmp.lt.s32.totalorder %s547, 1
      %s551 = scalar_select %p550, %s547, 1
      %s552 = smul.addr %s549, 2
      %s553 = sadd.s32 %s551, %s552
      %s554 = smul.addr %s553, 4
      %s555 = scalar_lea.vmem %s7, %s554
      // Predicated region
      $region49: #{pff2pre_forward.3} parent=47 // pred_check
        %p556 = pneg %p216
      $region50: #{pff2pre_forward.3} parent=47 // pred_check_branch
        %558 = sbr.rel (%p556) target = $region52
      $region51: #{pff2pre_forward.3} parent=47 // pred_region
        %s559 = smul.u32 2, %s23
      $region52: #{pff2pre_forward.3} parent=47 // pred_fallthru
        _
    $region48: #{pff2pre_forward.3} parent=5 // pred_fallthru
      _
    %p560 = scmp.le.s32.totalorder 2, %s13
    // Predicated region
    $region53: #{pff2pre_forward.3} parent=5 // pred_check
      %p561 = pneg %p560
    $region54: #{pff2pre_forward.3} parent=5 // pred_check_branch
      %563 = sbr.rel (%p561) target = $region56
    $region55: #{pff2pre_forward.3} parent=5 // pred_region
      %s564 = ssub.s32 %s13, 2
      // Predicated region
      $region57: #{pff2pre_forward.3} parent=55 // pred_check
        %p565 = pneg %p222
      $region58: #{pff2pre_forward.3} parent=55 // pred_check_branch
        %567 = sbr.rel (%p565) target = $region60
      $region59: #{pff2pre_forward.3} parent=55 // pred_region
        %s568 = smul.u32 2, %s25
        %p569 = scmp.lt.s32.totalorder %s24, 1
        %s570 = scalar_select %p569, %s24, 1
        %p571 = scmp.lt.s32.totalorder %s568, 1
        %s572 = scalar_select %p571, %s568, 1
        %s573 = smul.addr %s570, 2
        %s574 = sadd.s32 %s572, %s573
        %s575 = smul.addr %s574, 4
        %s576 = scalar_lea.vmem %s7, %s575
      $region60: #{pff2pre_forward.3} parent=55 // pred_fallthru
        _
    $region56: #{pff2pre_forward.3} parent=5 // pred_fallthru
      _
  $region6: #{pff2pre_forward.3} parent=0 // loop_footer
    %s17 = sadd.s32 1, %s13
  $region7: #{pff2pre_forward.3} parent=0 // loop_footer_branch
    %12 = sbr.rel target = $region3
  $region8: #{pff2pre_forward.3} parent=0 // loop_exit
    _

</llo_original>
